<compile_context>
chip_gen: v7x
topology: tpu7x:2x2x1
jax: 0.10.0
libtpu: 0.0.40
codegen_flags: <defaults>
</compile_context>

<pallas_src>
import jax
import jax.numpy as jnp
from jax.experimental import pallas as pl
from jax.experimental.pallas import tpu as pltpu

EPS = 1e-5
LANE = 128


def _round_up(x, m):
    return ((x + m - 1) // m) * m


def _choose_tile_m(kpad, cpad, vmem_budget_bytes=24 * 1024 * 1024):
    # Double-buffered bytes per M row: phase 1 (bf16 patches in + f32 y out) and
    # phase 2 (f32 y in + f32 out); take the larger.  Resident (Kpad, Cpad) weight
    # and (1, Cpad) vectors are negligible.
    per_row = max(2 * (kpad * 2 + cpad * 4), 2 * (2 * cpad * 4))
    tm = vmem_budget_bytes // max(per_row, 1)
    return max(8, min(1024, (tm // 8) * 8))


# --------------------- phase 1: conv matmul + BN channel statistics ---------------------


def _conv_stats_kernel(patches_ref, w_ref, y_ref, csum_ref, csq_ref):
    # patches_ref: (TM, Kpad) bf16   one M tile of im2col patches
    # w_ref:       (Kpad, Cpad) bf16 flattened conv weight (resident)
    # y_ref:       (TM, Cpad) f32    conv output tile
    # csum_ref / csq_ref: (1, Cpad) f32 resident per-channel sum / sum-of-squares
    @pl.when(pl.program_id(0) == 0)
    def _init():
        csum_ref[...] = jnp.zeros_like(csum_ref)
        csq_ref[...] = jnp.zeros_like(csq_ref)

    y = jnp.dot(patches_ref[...], w_ref[...], preferred_element_type=jnp.float32)
    y_ref[...] = y
    csum_ref[...] += jnp.sum(y, axis=0, keepdims=True)
    csq_ref[...] += jnp.sum(y * y, axis=0, keepdims=True)


# --------------------- phase 2: folded BatchNorm + ReLU ---------------------------------


def _bn_relu_kernel(y_ref, scale_ref, bias_ref, out_ref):
    # Folded BN: out = max(y * scale + bias, 0)   (one FMA + max per element)
    out_ref[...] = jnp.maximum(y_ref[...] * scale_ref[...] + bias_ref[...], 0.0)


def conv_bn_relu(x_nchw, weight, gamma, beta, *, kernel_size=3, padding=None, tile_m=None):
    """x_nchw: (N, Cin, H, W) f32; weight: (Cout, Cin, Kh, Kw); gamma/beta: (Cout,)."""
    n, cin, h, w = x_nchw.shape
    cout = weight.shape[0]
    kh = kw = kernel_size
    if padding is None:
        padding = kernel_size // 2

    # ---- glue: NCHW -> NHWC, pad, im2col with ordering c*Kh*Kw + i*Kw + j ----
    x_nhwc = jnp.transpose(x_nchw, (0, 2, 3, 1))                       # (N, H, W, Cin)
    xp = jnp.pad(x_nhwc, ((0, 0), (padding, padding), (padding, padding), (0, 0)))
    taps = [xp[:, i:i + h, j:j + w, :] for i in range(kh) for j in range(kw)]
    patches = jnp.stack(taps, axis=3)                                  # (N, H, W, Kh*Kw, Cin)
    patches = jnp.transpose(patches, (0, 1, 2, 4, 3))                  # (N, H, W, Cin, Kh*Kw)

    m = n * h * w
    k = cin * kh * kw
    patches = patches.reshape(m, k)

    # ---- pad to MXU / lane friendly sizes; cast matmul operands to bf16 ----
    kpad = _round_up(k, 8)
    cpad = _round_up(cout, LANE)

    if tile_m is None:
        tile_m = _choose_tile_m(kpad, cpad)
    tile_m = max(8, min(_round_up(m, 8), _round_up(tile_m, 8)))
    m_pad = _round_up(m, tile_m)
    num_tiles = m_pad // tile_m

    patches = jnp.pad(patches, ((0, m_pad - m), (0, kpad - k))).astype(jnp.bfloat16)

    w_mat = weight.reshape(cout, k)
    w_mat = jnp.pad(w_mat, ((0, cpad - cout), (0, kpad - k)))          # zero extra cols/rows
    w_mat = w_mat.T.astype(jnp.bfloat16)                               # (Kpad, Cpad)

    gamma_p = jnp.zeros((1, cpad), jnp.float32).at[0, :cout].set(gamma.astype(jnp.float32))
    beta_p = jnp.zeros((1, cpad), jnp.float32).at[0, :cout].set(beta.astype(jnp.float32))

    vmem_limit = 32 * 1024 * 1024  # tiles chosen against ~24 MiB -> safe on v5e/v6e/v7x

    # ---- phase 1: tiled MXU matmul + per-channel sum / sum-of-squares ----
    y_flat, csum, csq = pl.pallas_call(
        _conv_stats_kernel,
        out_shape=(
            jax.ShapeDtypeStruct((m_pad, cpad), jnp.float32),
            jax.ShapeDtypeStruct((1, cpad), jnp.float32),
            jax.ShapeDtypeStruct((1, cpad), jnp.float32),
        ),
        grid_spec=pltpu.PrefetchScalarGridSpec(
            num_scalar_prefetch=0,
            grid=(num_tiles,),
            in_specs=[
                pl.BlockSpec((tile_m, kpad), lambda i: (i, 0)),
                pl.BlockSpec((kpad, cpad), lambda i: (0, 0)),
            ],
            out_specs=[
                pl.BlockSpec((tile_m, cpad), lambda i: (i, 0)),
                pl.BlockSpec((1, cpad), lambda i: (0, 0)),
                pl.BlockSpec((1, cpad), lambda i: (0, 0)),
            ],
        ),
        compiler_params=pltpu.CompilerParams(
            dimension_semantics=("arbitrary",),      # stats accumulate across M tiles
            vmem_limit_bytes=vmem_limit),
    )(patches, w_mat)

    # ---- fold train-mode BN into per-channel scale/bias (tiny (1, Cpad) XLA math) ----
    inv_m = 1.0 / float(m)                            # divide by real M (zero-padded rows add 0)
    mean = csum * inv_m
    var = jnp.maximum(csq * inv_m - mean * mean, 0.0)  # biased variance, f32 accumulation
    scale = gamma_p * jax.lax.rsqrt(var + EPS)
    bias = beta_p - mean * scale

    # ---- phase 2: normalize + affine + ReLU (independent tiles -> parallel/megacore) ----
    out_flat = pl.pallas_call(
        _bn_relu_kernel,
        out_shape=jax.ShapeDtypeStruct((m_pad, cpad), jnp.float32),
        grid_spec=pltpu.PrefetchScalarGridSpec(
            num_scalar_prefetch=0,
            grid=(num_tiles,),
            in_specs=[
                pl.BlockSpec((tile_m, cpad), lambda i: (i, 0)),
                pl.BlockSpec((1, cpad), lambda i: (0, 0)),
                pl.BlockSpec((1, cpad), lambda i: (0, 0)),
            ],
            out_specs=pl.BlockSpec((tile_m, cpad), lambda i: (i, 0)),
        ),
        compiler_params=pltpu.CompilerParams(
            dimension_semantics=("parallel",),
            vmem_limit_bytes=vmem_limit),
    )(y_flat, scale, bias)

    out_nhwc = out_flat[:m, :cout].reshape(n, h, w, cout)
    return jnp.transpose(out_nhwc, (0, 3, 1, 2))                       # back to NCHW


def reference(x_nchw, weight, gamma, beta, *, padding=1):
    # Pure-JAX reference.  Mirror the kernel's bf16 quantization of the matmul
    # operands (products are exact in f32, accumulation is f32 in both paths) so the
    # comparison tolerance can stay tight.
    xq = x_nchw.astype(jnp.bfloat16).astype(jnp.float32)
    wq = weight.astype(jnp.bfloat16).astype(jnp.float32)
    y = jax.lax.conv_general_dilated(
        xq, wq, window_strides=(1, 1),
        padding=[(padding, padding), (padding, padding)],
        dimension_numbers=("NCHW", "OIHW", "NCHW"),
        precision=jax.lax.Precision.HIGHEST)
    mean = jnp.mean(y, axis=(0, 2, 3), keepdims=True)
    var = jnp.mean((y - mean) ** 2, axis=(0, 2, 3), keepdims=True)
    y = (y - mean) * jax.lax.rsqrt(var + EPS)
    y = y * gamma.reshape(1, -1, 1, 1) + beta.reshape(1, -1, 1, 1)
    return jnp.maximum(y, 0.0)


if __name__ == "__main__":
    key = jax.random.PRNGKey(0)
    kx, kw_ = jax.random.split(key)

    N, CIN, H, W = 2, 4, 16, 16
    COUT, K = 8, 3

    x = jax.random.normal(kx, (N, CIN, H, W), dtype=jnp.float32)
    weight = jax.random.normal(kw_, (COUT, CIN, K, K), dtype=jnp.float32) * (1.0 / (CIN * K * K) ** 0.5)
    gamma = jnp.ones((COUT,), dtype=jnp.float32)
    beta = jnp.zeros((COUT,), dtype=jnp.float32)

    # tile_m=128 -> 4 grid steps at this toy size, exercising the tiled pipeline and
    # the resident stats-accumulator path.  (Default tile_m auto-sizes for VMEM.)
    out = conv_bn_relu(x, weight, gamma, beta, kernel_size=K, padding=K // 2, tile_m=128)
    out = jax.block_until_ready(out)

    ref = reference(x, weight, gamma, beta, padding=K // 2)
    assert out.shape == (N, COUT, H, W)
    assert jnp.allclose(out, ref, atol=1e-3, rtol=1e-3)

    print("KERNEL_OK")
</pallas_src>

<mosaic_0001>
module attributes {stable_mosaic.version = 11 : i64} {
  func.func @_conv_stats_kernel(%arg0: i32, %arg1: memref<128x40xbf16, #tpu.memory_space<vmem>>, %arg2: memref<40x128xbf16, #tpu.memory_space<vmem>>, %arg3: memref<128x128xf32, #tpu.memory_space<vmem>>, %arg4: memref<1x128xf32, #tpu.memory_space<vmem>>, %arg5: memref<1x128xf32, #tpu.memory_space<vmem>>) attributes {dimension_semantics = [#tpu.dimension_semantics<arbitrary>], iteration_bounds = array<i64: 4>, scalar_prefetch = 0 : i64, scratch_operands = 0 : i64, tpu.core_type = #tpu.core_type<tc>, window_params = [{transform_indices = @transform_0, window_bounds = array<i64: 128, 40>}, {pipeline_mode = #tpu.pipeline_mode<synchronous>, transform_indices = @transform_1, window_bounds = array<i64: 40, 128>}, {transform_indices = @transform_2, window_bounds = array<i64: 128, 128>}, {pipeline_mode = #tpu.pipeline_mode<synchronous>, transform_indices = @transform_3, window_bounds = array<i64: 1, 128>}, {pipeline_mode = #tpu.pipeline_mode<synchronous>, transform_indices = @transform_4, window_bounds = array<i64: 1, 128>}]} {
    %c0_i32 = arith.constant 0 : i32
    %0 = arith.cmpi eq, %arg0, %c0_i32 : i32
    %1 = arith.extui %0 : i1 to i32
    %c0_i32_0 = arith.constant 0 : i32
    %2 = arith.cmpi ne, %1, %c0_i32_0 : i32
    scf.if %2 {
      %cst_16 = arith.constant 0.000000e+00 : f32
      %18 = vector.broadcast %cst_16 : f32 to vector<1x128xf32>
      %c0_17 = arith.constant 0 : index
      %c0_18 = arith.constant 0 : index
      %19 = vector.load %arg4[%c0_17, %c0_18] : memref<1x128xf32, #tpu.memory_space<vmem>>, vector<1x128xf32>
      tpu.vector_store %arg4[%c0_17, %c0_18], %18 {strides = array<i32>} : memref<1x128xf32, #tpu.memory_space<vmem>>, vector<1x128xf32>,
      %cst_19 = arith.constant 0.000000e+00 : f32
      %20 = vector.broadcast %cst_19 : f32 to vector<1x128xf32>
      %c0_20 = arith.constant 0 : index
      %c0_21 = arith.constant 0 : index
      %21 = vector.load %arg5[%c0_20, %c0_21] : memref<1x128xf32, #tpu.memory_space<vmem>>, vector<1x128xf32>
      tpu.vector_store %arg5[%c0_20, %c0_21], %20 {strides = array<i32>} : memref<1x128xf32, #tpu.memory_space<vmem>>, vector<1x128xf32>,
    } else {
    }
    %c0 = arith.constant 0 : index
    %c0_1 = arith.constant 0 : index
    %3 = vector.load %arg1[%c0, %c0_1] : memref<128x40xbf16, #tpu.memory_space<vmem>>, vector<128x40xbf16>
    %c0_2 = arith.constant 0 : index
    %c0_3 = arith.constant 0 : index
    %4 = vector.load %arg2[%c0_2, %c0_3] : memref<40x128xbf16, #tpu.memory_space<vmem>>, vector<40x128xbf16>
    %cst = arith.constant dense<0.000000e+00> : vector<128x128xf32>
    %5 = tpu.matmul %3, %4, %cst {dimension_numbers = #tpu.dot_dimension_numbers<[1], [0], [0], [1], [0, 0, 1, 1], [], []>} : vector<128x40xbf16>, vector<40x128xbf16>, vector<128x128xf32> -> vector<128x128xf32>
    %c0_4 = arith.constant 0 : index
    %c0_5 = arith.constant 0 : index
    %6 = vector.load %arg3[%c0_4, %c0_5] : memref<128x128xf32, #tpu.memory_space<vmem>>, vector<128x128xf32>
    tpu.vector_store %arg3[%c0_4, %c0_5], %5 {strides = array<i32>} : memref<128x128xf32, #tpu.memory_space<vmem>>, vector<128x128xf32>,
    %c0_6 = arith.constant 0 : index
    %c0_7 = arith.constant 0 : index
    %7 = vector.load %arg4[%c0_6, %c0_7] : memref<1x128xf32, #tpu.memory_space<vmem>>, vector<1x128xf32>
    %cst_8 = arith.constant dense<0.000000e+00> : vector<128xf32>
    %8 = vector.multi_reduction <add>, %5, %cst_8 [0] : vector<128x128xf32> to vector<128xf32>
    %9 = vector.shape_cast %8 : vector<128xf32> to vector<1x128xf32>
    %10 = arith.addf %7, %9 : vector<1x128xf32>
    %c0_9 = arith.constant 0 : index
    %c0_10 = arith.constant 0 : index
    %11 = vector.load %arg4[%c0_9, %c0_10] : memref<1x128xf32, #tpu.memory_space<vmem>>, vector<1x128xf32>
    tpu.vector_store %arg4[%c0_9, %c0_10], %10 {strides = array<i32>} : memref<1x128xf32, #tpu.memory_space<vmem>>, vector<1x128xf32>,
    %c0_11 = arith.constant 0 : index
    %c0_12 = arith.constant 0 : index
    %12 = vector.load %arg5[%c0_11, %c0_12] : memref<1x128xf32, #tpu.memory_space<vmem>>, vector<1x128xf32>
    %13 = arith.mulf %5, %5 : vector<128x128xf32>
    %cst_13 = arith.constant dense<0.000000e+00> : vector<128xf32>
    %14 = vector.multi_reduction <add>, %13, %cst_13 [0] : vector<128x128xf32> to vector<128xf32>
    %15 = vector.shape_cast %14 : vector<128xf32> to vector<1x128xf32>
    %16 = arith.addf %12, %15 : vector<1x128xf32>
    %c0_14 = arith.constant 0 : index
    %c0_15 = arith.constant 0 : index
    %17 = vector.load %arg5[%c0_14, %c0_15] : memref<1x128xf32, #tpu.memory_space<vmem>>, vector<1x128xf32>
    tpu.vector_store %arg5[%c0_14, %c0_15], %16 {strides = array<i32>} : memref<1x128xf32, #tpu.memory_space<vmem>>, vector<1x128xf32>,
    return
  }
  func.func @transform_0(%arg0: i32) -> (i32, i32) {
    %c0_i32 = arith.constant 0 : i32
    %c0_i32_0 = arith.constant 0 : i32
    return %arg0, %c0_i32 : i32, i32
  }
  func.func @transform_1(%arg0: i32) -> (i32, i32) {
    %c0_i32 = arith.constant 0 : i32
    %c0_i32_0 = arith.constant 0 : i32
    %c0_i32_1 = arith.constant 0 : i32
    return %c0_i32, %c0_i32_0 : i32, i32
  }
  func.func @transform_2(%arg0: i32) -> (i32, i32) {
    %c0_i32 = arith.constant 0 : i32
    %c0_i32_0 = arith.constant 0 : i32
    return %arg0, %c0_i32 : i32, i32
  }
  func.func @transform_3(%arg0: i32) -> (i32, i32) {
    %c0_i32 = arith.constant 0 : i32
    %c0_i32_0 = arith.constant 0 : i32
    %c0_i32_1 = arith.constant 0 : i32
    return %c0_i32, %c0_i32_0 : i32, i32
  }
  func.func @transform_4(%arg0: i32) -> (i32, i32) {
    %c0_i32 = arith.constant 0 : i32
    %c0_i32_0 = arith.constant 0 : i32
    %c0_i32_1 = arith.constant 0 : i32
    return %c0_i32, %c0_i32_0 : i32, i32
  }
}

</mosaic_0001>

<llo_original>
// kernel: tpu_custom_call.1
$region0: #{tpu_custom_call.1}
  #allocation0 [shape = 'u32[]', space=smem, size = 0x4, offset = 0x4, fixed_abs, tag = 'smem constant byte address 0x4 - core index']
  #allocation1 [shape = 'u32[144,128]{1,0:T(1,128)}', space=vmem, size = 0x12000, scoped, tag = 'internal scratch']
  %s0 = inlined_call_operand.vmem [shape: bf16[512,40], index: 0, kind: input, shape index: {}]
  %s1 = inlined_call_operand.vmem [shape: bf16[40,128], index: 1, kind: input, shape index: {}]
  %s2 = inlined_call_operand.hbm [shape: f32[512,128], index: 2, kind: output, shape index: {0}]
  %s3 = inlined_call_operand.hbm [shape: f32[1,128], index: 3, kind: output, shape index: {1}]
  %s4 = inlined_call_operand.hbm [shape: f32[1,128], index: 4, kind: output, shape index: {2}]
  %5 = xla_tuple %s2, %s3, %s4
  %s6 = sld [smem:[#allocation0]]
  $region61: #{tpu_custom_call.1} parent=0
    _
  %s8 = ssub.s32 1, %s6
  %s9 = scalar_select 0, %s8, %s6
  $region1: #{tpu_custom_call.1} parent=0
    #allocation2 [shape = 'u8[131072]{0}', space=vmem, size = 0x20000, scoped, tag = 'output window, operand 0']
    #allocation3 [shape = 's32[2]{0}', space=sflag, size = 0x8, scoped, tag = 'scoped memory for tpu_custom_call.1']
    #allocation4 [shape = 'u8[512]{0}', space=vmem, size = 0x400, scoped, tag = 'output window, operand 1, single buffered']
    #allocation5 [shape = 's32[1]{0}', space=sflag, size = 0x4, scoped, tag = 'scoped memory for tpu_custom_call.1']
    #allocation6 [shape = 'u8[512]{0}', space=vmem, size = 0x400, scoped, tag = 'output window, operand 2, single buffered']
    %10 = vsyncpa [#allocation3], 0
    %s11 = scalar_lea.sflag [#allocation3], 1
    %12 = vsyncpa %s11, 0
    %13 = vsyncpa [#allocation5], 0
    loop: start=0, step=1, limit=6
    $region2: #{tpu_custom_call.1} parent=1 // loop_pre_header
      _
    $region3: #{tpu_custom_call.1} parent=1 // loop_header
      %s15 = sphi 0, %s19
      %p16 = scmp.ge.s32.totalorder %s15, 6
      %s25 = sphi 0, %s27
      %s28 = sphi 0, %s25
      %s29 = sphi 0, %s28
      %s45 = sphi 0, %s29
      %s49 = sphi 0, %s49
      %s51 = sphi 0, %s49
      %s52 = sphi 0, %s51
      %s66 = sphi 0, %s52
      %s72 = sphi 0, %s74
      %s75 = sphi 0, %s72
      %s76 = sphi 0, %s75
      %s92 = sphi 0, %s76
      %s96 = sphi 0, %s96
      %s98 = sphi 0, %s96
      %s99 = sphi 0, %s98
      %s113 = sphi 0, %s99
      %s117 = sphi 0, %s117
      %s119 = sphi 0, %s117
      %s120 = sphi 0, %s119
      %s134 = sphi 0, %s120
    $region4: #{tpu_custom_call.1} parent=1 // loop_header_branch
      %18 = sbr.rel (%p16) target = $region8
    $region5: #{tpu_custom_call.1} parent=1 // loop_body
      %s20 = ssub.s32 %s15, 1
      %s21 = ssub.s32 %s15, 2
      %s22 = sadd.s32 %s15, 1
      %s23 = ssub.s32 %s15, %s22
      %p24 = scmp.eq.s32.totalorder %s23, 0
      %s26 = sadd.s32 %s25, 1
      %s27 = scalar_select %p24, %s25, %s26
      %p30 = pneg %p24
      %p31 = scmp.eq.s32.totalorder %s15, 3
      %p32 = por %p30, %p31
      %p33 = scmp.ne.s32.totalorder %s25, %s28
      %p34 = scmp.eq.s32.totalorder %s15, 0
      %p35 = por %p33, %p34
      %p36 = scmp.ne.s32.totalorder %s25, %s28
      %p37 = scmp.eq.s32.totalorder %s20, 3
      %p38 = por %p36, %p37
      %p39 = scmp.ne.s32.totalorder %s28, %s29
      %p40 = scmp.eq.s32.totalorder %s20, 0
      %p41 = por %p39, %p40
      %p42 = scmp.ne.s32.totalorder %s28, %s29
      %p43 = scmp.eq.s32.totalorder %s21, 3
      %p44 = por %p42, %p43
      %p46 = scmp.ne.s32.totalorder %s29, %s45
      %p47 = scmp.eq.s32.totalorder %s21, 0
      %p48 = por %p46, %p47
      %s50 = sadd.s32 %s49, 1
      %p53 = scmp.eq.s32.totalorder %s15, 3
      %p54 = scmp.ne.s32.totalorder %s49, %s51
      %p55 = scmp.eq.s32.totalorder %s15, 0
      %p56 = por %p54, %p55
      %p57 = scmp.ne.s32.totalorder %s49, %s51
      %p58 = scmp.eq.s32.totalorder %s20, 3
      %p59 = por %p57, %p58
      %p60 = scmp.ne.s32.totalorder %s51, %s52
      %p61 = scmp.eq.s32.totalorder %s20, 0
      %p62 = por %p60, %p61
      %p63 = scmp.ne.s32.totalorder %s51, %s52
      %p64 = scmp.eq.s32.totalorder %s21, 3
      %p65 = por %p63, %p64
      %p67 = scmp.ne.s32.totalorder %s52, %s66
      %p68 = scmp.eq.s32.totalorder %s21, 0
      %p69 = por %p67, %p68
      %s70 = ssub.s32 %s15, %s22
      %p71 = scmp.eq.s32.totalorder %s70, 0
      %s73 = sadd.s32 %s72, 1
      %s74 = scalar_select %p71, %s72, %s73
      %p77 = pneg %p71
      %p78 = scmp.eq.s32.totalorder %s15, 3
      %p79 = por %p77, %p78
      %p80 = scmp.ne.s32.totalorder %s72, %s75
      %p81 = scmp.eq.s32.totalorder %s15, 0
      %p82 = por %p80, %p81
      %p83 = scmp.ne.s32.totalorder %s72, %s75
      %p84 = scmp.eq.s32.totalorder %s20, 3
      %p85 = por %p83, %p84
      %p86 = scmp.ne.s32.totalorder %s75, %s76
      %p87 = scmp.eq.s32.totalorder %s20, 0
      %p88 = por %p86, %p87
      %p89 = scmp.ne.s32.totalorder %s75, %s76
      %p90 = scmp.eq.s32.totalorder %s21, 3
      %p91 = por %p89, %p90
      %p93 = scmp.ne.s32.totalorder %s76, %s92
      %p94 = scmp.eq.s32.totalorder %s21, 0
      %p95 = por %p93, %p94
      %s97 = sadd.s32 %s96, 1
      %p100 = scmp.eq.s32.totalorder %s15, 3
      %p101 = scmp.ne.s32.totalorder %s96, %s98
      %p102 = scmp.eq.s32.totalorder %s15, 0
      %p103 = por %p101, %p102
      %p104 = scmp.ne.s32.totalorder %s96, %s98
      %p105 = scmp.eq.s32.totalorder %s20, 3
      %p106 = por %p104, %p105
      %p107 = scmp.ne.s32.totalorder %s98, %s99
      %p108 = scmp.eq.s32.totalorder %s20, 0
      %p109 = por %p107, %p108
      %p110 = scmp.ne.s32.totalorder %s98, %s99
      %p111 = scmp.eq.s32.totalorder %s21, 3
      %p112 = por %p110, %p111
      %p114 = scmp.ne.s32.totalorder %s99, %s113
      %p115 = scmp.eq.s32.totalorder %s21, 0
      %p116 = por %p114, %p115
      %s118 = sadd.s32 %s117, 1
      %p121 = scmp.eq.s32.totalorder %s15, 3
      %p122 = scmp.ne.s32.totalorder %s117, %s119
      %p123 = scmp.eq.s32.totalorder %s15, 0
      %p124 = por %p122, %p123
      %p125 = scmp.ne.s32.totalorder %s117, %s119
      %p126 = scmp.eq.s32.totalorder %s20, 3
      %p127 = por %p125, %p126
      %p128 = scmp.ne.s32.totalorder %s119, %s120
      %p129 = scmp.eq.s32.totalorder %s20, 0
      %p130 = por %p128, %p129
      %p131 = scmp.ne.s32.totalorder %s119, %s120
      %p132 = scmp.eq.s32.totalorder %s21, 3
      %p133 = por %p131, %p132
      %p135 = scmp.ne.s32.totalorder %s120, %s134
      %p136 = scmp.eq.s32.totalorder %s21, 0
      %p137 = por %p135, %p136
      %p138 = scmp.le.s32.totalorder 1, %s15
      %p139 = scmp.lt.s32.totalorder %s15, 5
      %p140 = pnand %p138, %p139
      %p141 = pneg %p140
      // Predicated region
      $region9: #{tpu_custom_call.1} parent=5 // pred_check
        _
      $region10: #{tpu_custom_call.1} parent=5 // pred_check_branch
        %143 = sbr.rel (%p140) target = $region12
      $region11: #{tpu_custom_call.1} parent=5 // pred_region
        %s144 = ssub.s32 %s15, 1
        // Predicated region
        $region13: #{tpu_custom_call.1} parent=11 // pred_check
          %p145 = pneg %p62
        $region14: #{tpu_custom_call.1} parent=11 // pred_check_branch
          %147 = sbr.rel (%p145) target = $region16
        $region15: #{tpu_custom_call.1} parent=11 // pred_region
          _
        $region16: #{tpu_custom_call.1} parent=11 // pred_fallthru
          _
      $region12: #{tpu_custom_call.1} parent=5 // pred_fallthru
        _
      %p148 = scmp.lt.s32.totalorder %s15, 4
      // Predicated region
      $region17: #{tpu_custom_call.1} parent=5 // pred_check
        %p149 = pneg %p148
      $region18: #{tpu_custom_call.1} parent=5 // pred_check_branch
        %151 = sbr.rel (%p149) target = $region20
      $region19: #{tpu_custom_call.1} parent=5 // pred_region
        // Predicated region
        $region21: #{tpu_custom_call.1} parent=19 // pred_check
          %p152 = pneg %p35
        $region22: #{tpu_custom_call.1} parent=19 // pred_check_branch
          %154 = sbr.rel (%p152) target = $region24
        $region23: #{tpu_custom_call.1} parent=19 // pred_region
          %s155 = smul.u32 16, %s15
          %p156 = scmp.lt.s32.totalorder %s155, 63
          %s157 = scalar_select %p156, %s155, 63
          %s158 = smul.addr %s157, 4
          %s159 = scalar_lea.vmem %s0, %s158
          %s160 = smul.u32 16, %s15
        $region24: #{tpu_custom_call.1} parent=19 // pred_fallthru
          _
      $region20: #{tpu_custom_call.1} parent=5 // pred_fallthru
        _
      %p161 = scmp.le.s32.totalorder 1, %s15
      %p162 = scmp.lt.s32.totalorder %s15, 5
      %p163 = pnand %p161, %p162
      %p164 = pneg %p163
      // Predicated region
      $region25: #{tpu_custom_call.1} parent=5 // pred_check
        _
      $region26: #{tpu_custom_call.1} parent=5 // pred_check_branch
        %166 = sbr.rel (%p163) target = $region28
      $region27: #{tpu_custom_call.1} parent=5 // pred_region
        %s167 = ssub.s32 %s15, 1
        %s168 = smul.u32 16, %s20
        %p169 = scmp.lt.s32.totalorder %s168, 63
        %s170 = scalar_select %p169, %s168, 63
        %s171 = smul.addr %s170, 4
        %s172 = scalar_lea.vmem %s0, %s171
        %p173 = pneg %p41
        %p174 = pneg %p38
        %p175 = pneg %p62
        %p176 = pneg %p59
        %p177 = pneg %p88
        %p178 = pneg %p85
        %s179 = sand.u32 %s75, 1
        %s180 = scalar_lea.sflag [#allocation3], %s179
        %s181 = sand.u32 %s75, 1
        %s182 = smul.addr %s181, 128
        %s183 = scalar_lea.vmem [#allocation2], %s182
        %p184 = pneg %p109
        %p185 = pneg %p106
        %p186 = pneg %p130
        %p187 = pneg %p127
        %s188 = smul.u32 16, %s20
        %p189 = scmp.lt.s32.totalorder %s188, 63
        %s190 = scalar_select %p189, %s188, 63
        %s191 = smul.addr %s190, 4
        %s192 = scalar_lea.vmem %s0, %s191
        %s193 = smul.u32 16, %s20
        %s194 = smul.u32 16, %s20
        %p196 = scmp.eq.s32.totalorder %s20, 0
        // Predicated region
        $region29: #{tpu_custom_call.1} parent=27 // pred_check
          %p197 = pneg %p196
        $region30: #{tpu_custom_call.1} parent=27 // pred_check_branch
          %199 = sbr.rel (%p197) target = $region32
        $region31: #{tpu_custom_call.1} parent=27 // pred_region
          %200 = vst [vmem:[#allocation4] sm:$0x1] 0.0
          %201 = vst [vmem:[#allocation6] sm:$0x1] 0.0
        $region32: #{tpu_custom_call.1} parent=27 // pred_fallthru
          _
        %v202 = vld [vmem:[%s192] sm:$0xf]
        %v203 = vld [vmem:[%s192 + $0x4] sm:$0xf]
        %v204 = vld [vmem:[%s192 + $0x8] sm:$0xf]
        %v205 = vld [vmem:[%s192 + $0xc] sm:$0xf]
        %v206 = vld [vmem:[%s192 + $0x10] sm:$0xf]
        %v207 = vld [vmem:[%s192 + $0x14] sm:$0xf]
        %v208 = vld [vmem:[%s192 + $0x18] sm:$0xf]
        %v209 = vld [vmem:[%s192 + $0x1c] sm:$0xf]
        %v210 = vld [vmem:[%s192 + $0x20] sm:$0xf]
        %v211 = vld [vmem:[%s192 + $0x24] sm:$0xf]
        %v212 = vld [vmem:[%s192 + $0x28] sm:$0xf]
        %v213 = vld [vmem:[%s192 + $0x2c] sm:$0xf]
        %v214 = vld [vmem:[%s192 + $0x30] sm:$0xf]
        %v215 = vld [vmem:[%s192 + $0x34] sm:$0xf]
        %v216 = vld [vmem:[%s192 + $0x38] sm:$0xf]
        %v217 = vld [vmem:[%s192 + $0x3c] sm:$0xf]
        %v218 = vld [vmem:[%s1] sm:$0xf]
        %v219 = vld [vmem:[%s1 + $0x4] sm:$0xf]
        %v220 = vld [vmem:[%s1 + $0x8] sm:$0xf]
        %v221 = vld [vmem:[%s1 + $0xc] sm:$0xf]
        %v222 = vld [vmem:[%s1 + $0x10] sm:$0xf]
        %v239 = vunpack.c.l.b16 %v202
        %v240 = vunpack.c.l.b16 %v203
        %v241 = vunpack.c.l.b16 %v204
        %v242 = vunpack.c.l.b16 %v205
        %v243 = vunpack.c.l.b16 %v206
        %v244 = vunpack.c.l.b16 %v207
        %v245 = vunpack.c.l.b16 %v208
        %v246 = vunpack.c.l.b16 %v209
        %v247 = vunpack.c.l.b16 %v210
        %v248 = vunpack.c.l.b16 %v211
        %v249 = vunpack.c.l.b16 %v212
        %v250 = vunpack.c.l.b16 %v213
        %v251 = vunpack.c.l.b16 %v214
        %v252 = vunpack.c.l.b16 %v215
        %v253 = vunpack.c.l.b16 %v216
        %v254 = vunpack.c.l.b16 %v217
        %v255 = vpack.c.b16 %v240, %v239
        %v256 = vpack.c.b16 %v242, %v241
        %v257 = vpack.c.b16 %v244, %v243
        %v258 = vpack.c.b16 %v246, %v245
        %v259 = vpack.c.b16 %v248, %v247
        %v260 = vpack.c.b16 %v250, %v249
        %v261 = vpack.c.b16 %v252, %v251
        %v262 = vpack.c.b16 %v254, %v253
        %v268 = vunpack.c.l.b16 %v218
        %v269 = vunpack.c.l.b16 %v219
        %v270 = vunpack.c.l.b16 %v220
        %v271 = vunpack.c.l.b16 %v221
        %v272 = vunpack.c.l.b16 %v222
        %v273 = vpack.c.b16 %v269, %v268
        %v274 = vpack.c.b16 %v271, %v270
        %v275 = vpack.c.b16 %v272, %v272
        %vm278 = vcmask 326656
        %v280 = vsel %vm278, %v255, 0
        %v283 = vsel %vm278, %v256, 0
        %v286 = vsel %vm278, %v257, 0
        %v289 = vsel %vm278, %v258, 0
        %v292 = vsel %vm278, %v259, 0
        %v295 = vsel %vm278, %v260, 0
        %v298 = vsel %vm278, %v261, 0
        %v301 = vsel %vm278, %v262, 0
        %vm303 = vcmask 1043456
        %v305 = vsel %vm303, %v275, 0
        %307 = vmatprep.subr.bf16.mxu0 0
        %308 = vmatpush1.bf16.msra.mxu0 %v273
        %309 = vmatprep.subr.bf16.mxu0 0
        %310 = vmatpush1.bf16.msra.mxu0 %v274
        %311 = vmatprep.subr.bf16.mxu0 0
        %312 = vmatpush1.bf16.msra.mxu0 %v305
        %313 = vmatprep.subr.bf16.mxu0 0
        %314 = vmatpush1.bf16.msra.mxu0 0
        %315 = vmatprep.subr.bf16.mxu0 0
        %316 = vmatpush1.bf16.msra.mxu0 0
        %317 = vmatprep.subr.bf16.mxu0 0
        %318 = vmatpush1.bf16.msra.mxu0 0
        %319 = vmatprep.subr.bf16.mxu0 0
        %320 = vmatpush1.bf16.msra.mxu0 0
        %321 = vmatprep.subr.bf16.mxu0 0
        %322 = vmatpush1.bf16.msra.mxu0 0
        %323 = vmatprep.subr.bf16.mxu0 0
        %324 = vmatpush1.bf16.msra.mxu0 0
        %325 = vmatprep.subr.bf16.mxu0 0
        %326 = vmatpush1.bf16.msra.mxu0 0
        %327 = vmatprep.subr.bf16.mxu0 0
        %328 = vmatpush1.bf16.msra.mxu0 0
        %329 = vmatprep.subr.bf16.mxu0 0
        %330 = vmatpush1.bf16.msra.mxu0 0
        %331 = vmatprep.subr.bf16.mxu0 0
        %332 = vmatpush1.bf16.msra.mxu0 0
        %333 = vmatprep.subr.bf16.mxu0 0
        %334 = vmatpush1.bf16.msra.mxu0 0
        %335 = vmatprep.subr.bf16.mxu0 0
        %336 = vmatpush1.bf16.msra.mxu0 0
        %337 = vmatprep.subr.bf16.mxu0 0
        %338 = vmatpush1.bf16.msra.mxu0 0
        %339 = vmatprep.mubr.bf16.mxu0 0
        %340 = vmatmul.mubr.bf16.gmra.mrb[0].mxu0 %v280
        %v341 = vpop.f32.mrb[0].mxu0
        %v342 = vadd.f32 0.0, %v341
        %v343 = vpop.f32.mrb[0].mxu0
        %v344 = vpop.f32.mrb[0].mxu0
        %v345 = vadd.f32 0.0, %v344
        %v346 = vpop.f32.mrb[0].mxu0
        %347 = vmatprep.mubr.bf16.mxu0 0
        %348 = vmatmul.mubr.bf16.gmra.mrb[0].mxu0 %v283
        %v349 = vpop.f32.mrb[0].mxu0
        %v350 = vadd.f32 0.0, %v349
        %v351 = vpop.f32.mrb[0].mxu0
        %v352 = vpop.f32.mrb[0].mxu0
        %v353 = vadd.f32 0.0, %v352
        %v354 = vpop.f32.mrb[0].mxu0
        %355 = vmatprep.mubr.bf16.mxu0 0
        %356 = vmatmul.mubr.bf16.gmra.mrb[0].mxu0 %v286
        %v357 = vpop.f32.mrb[0].mxu0
        %v358 = vadd.f32 0.0, %v357
        %v359 = vpop.f32.mrb[0].mxu0
        %v360 = vpop.f32.mrb[0].mxu0
        %v361 = vadd.f32 0.0, %v360
        %v362 = vpop.f32.mrb[0].mxu0
        %363 = vmatprep.mubr.bf16.mxu0 0
        %364 = vmatmul.mubr.bf16.gmra.mrb[0].mxu0 %v289
        %v365 = vpop.f32.mrb[0].mxu0
        %v366 = vadd.f32 0.0, %v365
        %v367 = vpop.f32.mrb[0].mxu0
        %v368 = vpop.f32.mrb[0].mxu0
        %v369 = vadd.f32 0.0, %v368
        %v370 = vpop.f32.mrb[0].mxu0
        %371 = vmatprep.mubr.bf16.mxu0 0
        %372 = vmatmul.mubr.bf16.gmra.mrb[0].mxu0 %v292
        %v373 = vpop.f32.mrb[0].mxu0
        %v374 = vadd.f32 0.0, %v373
        %v375 = vpop.f32.mrb[0].mxu0
        %v376 = vpop.f32.mrb[0].mxu0
        %v377 = vadd.f32 0.0, %v376
        %v378 = vpop.f32.mrb[0].mxu0
        %379 = vmatprep.mubr.bf16.mxu0 0
        %380 = vmatmul.mubr.bf16.gmra.mrb[0].mxu0 %v295
        %v381 = vpop.f32.mrb[0].mxu0
        %v382 = vadd.f32 0.0, %v381
        %v383 = vpop.f32.mrb[0].mxu0
        %v384 = vpop.f32.mrb[0].mxu0
        %v385 = vadd.f32 0.0, %v384
        %v386 = vpop.f32.mrb[0].mxu0
        %387 = vmatprep.mubr.bf16.mxu0 0
        %388 = vmatmul.mubr.bf16.gmra.mrb[0].mxu0 %v298
        %v389 = vpop.f32.mrb[0].mxu0
        %v390 = vadd.f32 0.0, %v389
        %v391 = vpop.f32.mrb[0].mxu0
        %v392 = vpop.f32.mrb[0].mxu0
        %v393 = vadd.f32 0.0, %v392
        %v394 = vpop.f32.mrb[0].mxu0
        %395 = vmatprep.mubr.bf16.mxu0 0
        %396 = vmatmul.mubr.bf16.gmra.mrb[0].mxu0 %v301
        %v397 = vpop.f32.mrb[0].mxu0
        %v398 = vadd.f32 0.0, %v397
        %v399 = vpop.f32.mrb[0].mxu0
        %v400 = vpop.f32.mrb[0].mxu0
        %v401 = vadd.f32 0.0, %v400
        %v402 = vpop.f32.mrb[0].mxu0
        %403 = vdwg.mxu0
        %404 = vst [vmem:[%s183] sm:$0xff] %v342
        %405 = vst [vmem:[%s183 + $0x8] sm:$0xff] %v345
        %406 = vst [vmem:[%s183 + $0x10] sm:$0xff] %v350
        %407 = vst [vmem:[%s183 + $0x18] sm:$0xff] %v353
        %408 = vst [vmem:[%s183 + $0x20] sm:$0xff] %v358
        %409 = vst [vmem:[%s183 + $0x28] sm:$0xff] %v361
        %410 = vst [vmem:[%s183 + $0x30] sm:$0xff] %v366
        %411 = vst [vmem:[%s183 + $0x38] sm:$0xff] %v369
        %412 = vst [vmem:[%s183 + $0x40] sm:$0xff] %v374
        %413 = vst [vmem:[%s183 + $0x48] sm:$0xff] %v377
        %414 = vst [vmem:[%s183 + $0x50] sm:$0xff] %v382
        %415 = vst [vmem:[%s183 + $0x58] sm:$0xff] %v385
        %416 = vst [vmem:[%s183 + $0x60] sm:$0xff] %v390
        %417 = vst [vmem:[%s183 + $0x68] sm:$0xff] %v393
        %418 = vst [vmem:[%s183 + $0x70] sm:$0xff] %v398
        %419 = vst [vmem:[%s183 + $0x78] sm:$0xff] %v401
        %v420 = vld [vmem:[#allocation4] sm:$0x1]
        %v421 = vadd.f32 %v342, %v345
        %v422 = vadd.f32 %v421, %v350
        %v423 = vadd.f32 %v422, %v353
        %v424 = vadd.f32 %v423, %v358
        %v425 = vadd.f32 %v424, %v361
        %v426 = vadd.f32 %v425, %v366
        %v427 = vadd.f32 %v426, %v369
        %v428 = vadd.f32 %v427, %v374
        %v429 = vadd.f32 %v428, %v377
        %v430 = vadd.f32 %v429, %v382
        %v431 = vadd.f32 %v430, %v385
        %v432 = vadd.f32 %v431, %v390
        %v433 = vadd.f32 %v432, %v393
        %v434 = vadd.f32 %v433, %v398
        %v435 = vadd.f32 %v434, %v401
        %v436 = vrot.slane %v435, 4
        %v437 = vadd.f32 %v435, %v436
        %v438 = vrot.slane %v437, 2
        %v439 = vadd.f32 %v437, %v438
        %v440 = vrot.slane %v439, 1
        %v441 = vadd.f32 %v439, %v440
        %v442 = vadd.f32 %v420, %v441
        %443 = vst [vmem:[#allocation4] sm:$0x1] %v442
        %v444 = vld [vmem:[#allocation6] sm:$0x1]
        %v445 = vmul.f32 %v342, %v342
        %v446 = vmul.f32 %v345, %v345
        %v447 = vmul.f32 %v350, %v350
        %v448 = vmul.f32 %v353, %v353
        %v449 = vmul.f32 %v358, %v358
        %v450 = vmul.f32 %v361, %v361
        %v451 = vmul.f32 %v366, %v366
        %v452 = vmul.f32 %v369, %v369
        %v453 = vmul.f32 %v374, %v374
        %v454 = vmul.f32 %v377, %v377
        %v455 = vmul.f32 %v382, %v382
        %v456 = vmul.f32 %v385, %v385
        %v457 = vmul.f32 %v390, %v390
        %v458 = vmul.f32 %v393, %v393
        %v459 = vmul.f32 %v398, %v398
        %v460 = vmul.f32 %v401, %v401
        %v461 = vadd.f32 %v445, %v446
        %v462 = vadd.f32 %v461, %v447
        %v463 = vadd.f32 %v462, %v448
        %v464 = vadd.f32 %v463, %v449
        %v465 = vadd.f32 %v464, %v450
        %v466 = vadd.f32 %v465, %v451
        %v467 = vadd.f32 %v466, %v452
        %v468 = vadd.f32 %v467, %v453
        %v469 = vadd.f32 %v468, %v454
        %v470 = vadd.f32 %v469, %v455
        %v471 = vadd.f32 %v470, %v456
        %v472 = vadd.f32 %v471, %v457
        %v473 = vadd.f32 %v472, %v458
        %v474 = vadd.f32 %v473, %v459
        %v475 = vadd.f32 %v474, %v460
        %v476 = vrot.slane %v475, 4
        %v477 = vadd.f32 %v475, %v476
        %v478 = vrot.slane %v477, 2
        %v479 = vadd.f32 %v477, %v478
        %v480 = vrot.slane %v479, 1
        %v481 = vadd.f32 %v479, %v480
        %v482 = vadd.f32 %v444, %v481
        %483 = vst [vmem:[#allocation6] sm:$0x1] %v482
        %s484 = sand.u32 %s75, 1
        %s485 = scalar_lea.sflag [#allocation3], %s484
        %s486 = sand.u32 %s75, 1
        %s487 = smul.addr %s486, 128
        %s488 = scalar_lea.vmem [#allocation2], %s487
        // Predicated region
        $region33: #{tpu_custom_call.1} parent=27 // pred_check
          %p489 = pneg %p85
        $region34: #{tpu_custom_call.1} parent=27 // pred_check_branch
          %491 = sbr.rel (%p489) target = $region36
        $region35: #{tpu_custom_call.1} parent=27 // pred_region
          %s492 = smul.u32 16, %s20
          %s494 = ssub.s32 2048, 2048
          %495 = vsyncadd %s485, %s494
          %s496 = smul.addr %s492, 128
          %s497 = scalar_lea.hbm %s2, %s496
          %s498 = sshll.u32 %s488, 4
          %s499 = int_to_ptr.vmem [resolvable:$true] %s498
          %504 = dma.vmem_to_hbm [thread:$0]  %s499, 2048, %s497, %s485, 128, 128, 8
        $region36: #{tpu_custom_call.1} parent=27 // pred_fallthru
          _
        // Predicated region
        $region37: #{tpu_custom_call.1} parent=27 // pred_check
          %p505 = pneg %p106
        $region38: #{tpu_custom_call.1} parent=27 // pred_check_branch
          %507 = sbr.rel (%p505) target = $region40
        $region39: #{tpu_custom_call.1} parent=27 // pred_region
          %s509 = ssub.s32 16, 16
          %510 = vsyncadd [#allocation5], %s509
          %s512 = sshll.u32 [#allocation4], 4
          %s513 = int_to_ptr.vmem [resolvable:$true] %s512
          %515 = dma.vmem_to_hbm [thread:$0]  %s513, 16, %s3, [#allocation5]
        $region40: #{tpu_custom_call.1} parent=27 // pred_fallthru
          _
        // Predicated region
        $region41: #{tpu_custom_call.1} parent=27 // pred_check
          %p516 = pneg %p127
        $region42: #{tpu_custom_call.1} parent=27 // pred_check_branch
          %518 = sbr.rel (%p516) target = $region44
        $region43: #{tpu_custom_call.1} parent=27 // pred_region
          %s520 = ssub.s32 16, 16
          %521 = vsyncadd [#allocation5], %s520
          %s523 = sshll.u32 [#allocation6], 4
          %s524 = int_to_ptr.vmem [resolvable:$true] %s523
          %526 = dma.vmem_to_hbm [thread:$0]  %s524, 16, %s4, [#allocation5]
        $region44: #{tpu_custom_call.1} parent=27 // pred_fallthru
          _
        // Predicated region
        $region45: #{tpu_custom_call.1} parent=27 // pred_check
          %p527 = pneg %p106
        $region46: #{tpu_custom_call.1} parent=27 // pred_check_branch
          %529 = sbr.rel (%p527) target = $region48
        $region47: #{tpu_custom_call.1} parent=27 // pred_region
          %530 = dma.done [#allocation5], 16
        $region48: #{tpu_custom_call.1} parent=27 // pred_fallthru
          _
        // Predicated region
        $region49: #{tpu_custom_call.1} parent=27 // pred_check
          %p531 = pneg %p127
        $region50: #{tpu_custom_call.1} parent=27 // pred_check_branch
          %533 = sbr.rel (%p531) target = $region52
        $region51: #{tpu_custom_call.1} parent=27 // pred_region
          %534 = dma.done [#allocation5], 16
        $region52: #{tpu_custom_call.1} parent=27 // pred_fallthru
          _
      $region28: #{tpu_custom_call.1} parent=5 // pred_fallthru
        _
      %p535 = scmp.le.s32.totalorder 2, %s15
      // Predicated region
      $region53: #{tpu_custom_call.1} parent=5 // pred_check
        %p536 = pneg %p535
      $region54: #{tpu_custom_call.1} parent=5 // pred_check_branch
        %538 = sbr.rel (%p536) target = $region56
      $region55: #{tpu_custom_call.1} parent=5 // pred_region
        %s539 = ssub.s32 %s15, 2
        // Predicated region
        $region57: #{tpu_custom_call.1} parent=55 // pred_check
          %p540 = pneg %p91
        $region58: #{tpu_custom_call.1} parent=55 // pred_check_branch
          %542 = sbr.rel (%p540) target = $region60
        $region59: #{tpu_custom_call.1} parent=55 // pred_region
          %s543 = sand.u32 %s76, 1
          %s544 = scalar_lea.sflag [#allocation3], %s543
          %s545 = sand.u32 %s76, 1
          %s546 = smul.addr %s545, 128
          %s547 = scalar_lea.vmem [#allocation2], %s546
          %548 = dma.done %s544, 2048
        $region60: #{tpu_custom_call.1} parent=55 // pred_fallthru
          _
      $region56: #{tpu_custom_call.1} parent=5 // pred_fallthru
        _
    $region6: #{tpu_custom_call.1} parent=1 // loop_footer
      %s19 = sadd.s32 1, %s15
    $region7: #{tpu_custom_call.1} parent=1 // loop_footer_branch
      %14 = sbr.rel target = $region3
    $region8: #{tpu_custom_call.1} parent=1 // loop_exit
      _
    %549 = vsyncpa [#allocation3], 1
    %s550 = scalar_lea.sflag [#allocation3], 1
    %551 = vsyncpa %s550, 1
    %552 = vsyncpa [#allocation5], 1

</llo_original>
